<compile_context>
chip_gen: v6e
topology: v6e:2x2x1
jax: 0.10.0
libtpu: 0.0.40
codegen_flags: <defaults>
</compile_context>

<pallas_src>
import functools

import jax
import jax.numpy as jnp
from jax import lax
from jax.experimental import pallas as pl
from jax.experimental.pallas import tpu as pltpu


# --------------------------------------------------------------------------- #
# Kernel
# --------------------------------------------------------------------------- #
def _patch_merging_kernel(x0_ref, x1_ref, w_ref, sb_ref, o_ref, *,
                          eps, matmul_dtype):
    """Fused 2x2 merge + LayerNorm(4C) + Linear(4C->Co) with affine pre-folded.

    x0_ref : (bb, ti, Wo, 2C)  even input rows -> half [x0 | x2] of the 4C token
    x1_ref : (bb, ti, Wo, 2C)  odd  input rows -> half [x1 | x3]
    w_ref  : (2, 2C, Co)       gamma-scaled, permuted halves of weight.T
    sb_ref : (2, Co)           row 0: colsum(gamma*W);  row 1: beta @ W
    o_ref  : (bb, ti*Wo, Co)
    """
    bb, ti, Wo, C2 = x0_ref.shape
    n = bb * ti * Wo
    Co = o_ref.shape[-1]

    h0 = x0_ref[...].reshape(n, C2)
    h1 = x1_ref[...].reshape(n, C2)

    # One-pass LayerNorm statistics over the (virtual) 4C feature, in f32.
    f0 = h0.astype(jnp.float32)
    f1 = h1.astype(jnp.float32)
    inv_4c = 1.0 / (2.0 * C2)
    mean = (jnp.sum(f0, axis=-1, keepdims=True)
            + jnp.sum(f1, axis=-1, keepdims=True)) * inv_4c
    ex2 = (jnp.sum(f0 * f0, axis=-1, keepdims=True)
           + jnp.sum(f1 * f1, axis=-1, keepdims=True)) * inv_4c
    var = jnp.maximum(ex2 - mean * mean, 0.0)
    rstd = lax.rsqrt(var + eps)

    # Linear(4C -> Co): two lane-dense MXU matmuls (one per half), f32 acc.
    # Note: for C < 128 a single (n, 4C)x(4C, Co) dot would use the 256-wide
    # MXU better, but it needs a lane-axis concat; skipped while memory-bound.
    p = (jnp.dot(h0.astype(matmul_dtype), w_ref[0],
                 preferred_element_type=jnp.float32)
         + jnp.dot(h1.astype(matmul_dtype), w_ref[1],
                   preferred_element_type=jnp.float32))

    # LayerNorm folded back in on the narrow output:
    #   out = rstd * (x @ (gamma*W) - mean * colsum(gamma*W)) + beta @ W
    sb = sb_ref[...]
    y = (p - mean * sb[0:1, :]) * rstd + sb[1:2, :]
    o_ref[...] = y.reshape(bb, ti * Wo, Co).astype(o_ref.dtype)


# --------------------------------------------------------------------------- #
# Parameter folding (run once per layer, outside the forward path)
# --------------------------------------------------------------------------- #
def prepare_patch_merging_params(gamma, beta, weight, *,
                                 matmul_dtype=jnp.bfloat16):
    """Fold the PyTorch [x0|x1|x2|x3] channel order and the LayerNorm affine
    into the Linear weights.  Returns (w_packed (2,2C,Co), sb (2,Co))."""
    (C4,) = gamma.shape
    C = C4 // 4
    Co = weight.shape[0]
    assert weight.shape == (Co, C4) and beta.shape == (C4,)

    wt = jnp.transpose(weight, (1, 0)).astype(jnp.float32)   # (4C, Co)
    g = gamma.astype(jnp.float32)
    b = beta.astype(jnp.float32)

    # even input rows carry [x0 | x2]; odd input rows carry [x1 | x3]
    w0 = jnp.concatenate([wt[:C], wt[2 * C:3 * C]], axis=0)          # (2C, Co)
    w1 = jnp.concatenate([wt[C:2 * C], wt[3 * C:]], axis=0)          # (2C, Co)
    g0 = jnp.concatenate([g[:C], g[2 * C:3 * C]])[:, None]
    g1 = jnp.concatenate([g[C:2 * C], g[3 * C:]])[:, None]
    b0 = jnp.concatenate([b[:C], b[2 * C:3 * C]])[:, None]
    b1 = jnp.concatenate([b[C:2 * C], b[3 * C:]])[:, None]

    w0g = g0 * w0
    w1g = g1 * w1
    col_sum = jnp.sum(w0g, axis=0) + jnp.sum(w1g, axis=0)     # == gamma @ weight.T
    bias = jnp.sum(b0 * w0, axis=0) + jnp.sum(b1 * w1, axis=0)  # == beta @ weight.T

    w_packed = jnp.stack([w0g, w1g], axis=0).astype(matmul_dtype)   # (2, 2C, Co)
    sb = jnp.stack([col_sum, bias], axis=0).astype(jnp.float32)     # (2, Co)
    return w_packed, sb


# --------------------------------------------------------------------------- #
# VMEM budgeting & tiling
# --------------------------------------------------------------------------- #
def _vmem_budget_bytes():
    """(scoped VMEM limit to request, per-step live-set budget) in bytes."""
    cap = None
    try:
        info = pltpu.get_tpu_info()
        cap = int(getattr(info, "vmem_capacity_bytes", 0)) or None
    except Exception:
        cap = None
    if cap is None:
        cap = 64 << 20                      # conservative: v7x has 64 MiB / TC
    limit = min(cap // 2, 64 << 20)         # ~32 MiB on v7x, 64 MiB on v5e/v6e
    budget = limit * 3 // 4                 # headroom for compiler scratch
    return int(limit), int(budget)


def _select_tiling(B, Ho, Wo, C2, Co, x_isz, out_isz, mm_isz, budget):
    """Pick (images per block bb, merged rows per block ti)."""
    def step_bytes(bb, ti):
        n = bb * ti * Wo
        in_b = 2 * n * C2 * x_isz                      # even + odd input blocks
        out_b = n * Co * out_isz
        tmp_b = n * (2 * C2 * 4 + Co * 4 + 2 * C2 * mm_isz)  # f32 stats/acc + casts
        return 2 * (in_b + out_b) + tmp_b              # 2x: double buffering

    cand = [t for t in range(1, Ho + 1)
            if Ho % t == 0 and ((t * Wo) % 8 == 0 or t == Ho)]
    fits = [t for t in cand if step_bytes(1, t) <= budget]
    ti = max(fits) if fits else min(cand)
    bb = 1
    if ti == Ho:
        if B > 1:
            # Whole image fits: span several images while the budget allows,
            # keeping >= 2 grid steps so both v7x TensorCores get work.
            for c in range(max(1, B // 2), 0, -1):
                if B % c == 0 and step_bytes(c, Ho) <= budget:
                    bb = c
                    break
        else:
            # B == 1: prefer >= 2 row steps over a degenerate (1, 1) grid.
            smaller = [t for t in fits if t <= Ho // 2]
            if smaller:
                ti = max(smaller)
    return bb, ti


# --------------------------------------------------------------------------- #
# Forward
# --------------------------------------------------------------------------- #
def patch_merging_forward(x, params, input_resolution, *, eps=1e-5,
                          out_dtype=None, block_batch=None, block_rows=None):
    """x: (B, H*W, C); params: output of prepare_patch_merging_params."""
    H, W = input_resolution
    B, L, C = x.shape
    assert L == H * W, "input feature has wrong size"
    assert H % 2 == 0 and W % 2 == 0, f"x size ({H}*{W}) are not even."
    Ho, Wo = H // 2, W // 2
    C2 = 2 * C

    w_packed, sb = params
    assert w_packed.shape[0] == 2 and w_packed.shape[1] == C2
    Co = w_packed.shape[2]
    out_dtype = x.dtype if out_dtype is None else out_dtype

    # Zero-copy even/odd-row view: x5[b, i, r, j, :] holds the 2C channels of
    # pixels (2i + r, 2j) and (2i + r, 2j + 1).
    x5 = x.reshape(B, Ho, 2, Wo, C2)

    limit, budget = _vmem_budget_bytes()
    weight_bytes = 2 * (w_packed.size * w_packed.dtype.itemsize
                        + sb.size * sb.dtype.itemsize)      # (double-buffered)
    bb, ti = _select_tiling(
        B, Ho, Wo, C2, Co,
        jnp.dtype(x.dtype).itemsize, jnp.dtype(out_dtype).itemsize,
        jnp.dtype(w_packed.dtype).itemsize,
        max(budget - weight_bytes, 1 << 20))
    if block_batch is not None:
        bb = block_batch
    if block_rows is not None:
        ti = block_rows
    assert B % bb == 0 and Ho % ti == 0
    assert (ti * Wo) % 8 == 0 or ti == Ho, "output block must be sublane aligned"

    kernel = functools.partial(_patch_merging_kernel, eps=float(eps),
                               matmul_dtype=w_packed.dtype)

    out = pl.pallas_call(
        kernel,
        out_shape=jax.ShapeDtypeStruct((B, Ho * Wo, Co), out_dtype),
        grid=(B // bb, Ho // ti),
        in_specs=[
            # even / odd input rows of each 2x2 block: the pipeline DMA does
            # the row de-interleave (same array, two index maps).
            pl.BlockSpec((bb, ti, None, Wo, C2), lambda b, i: (b, i, 0, 0, 0)),
            pl.BlockSpec((bb, ti, None, Wo, C2), lambda b, i: (b, i, 1, 0, 0)),
            # resident packed parameters (constant index maps).
            pl.BlockSpec((2, C2, Co), lambda b, i: (0, 0, 0)),
            pl.BlockSpec((2, Co), lambda b, i: (0, 0)),
        ],
        out_specs=pl.BlockSpec((bb, ti * Wo, Co), lambda b, i: (b, i, 0)),
        compiler_params=pltpu.CompilerParams(
            dimension_semantics=("parallel", "parallel"),
            vmem_limit_bytes=limit),
    )(x5, x5, w_packed, sb)

    return out, (Ho, Wo)


# --------------------------------------------------------------------------- #
# Demo / self-check
# --------------------------------------------------------------------------- #
if __name__ == "__main__":
    B, H, W, dim = 2, 16, 16, 64
    eps = 1e-5

    key = jax.random.PRNGKey(0)
    kx, kg, kb, kw = jax.random.split(key, 4)
    x_f32 = jax.random.normal(kx, (B, H * W, dim), jnp.float32)
    gamma = jax.random.uniform(kg, (4 * dim,), jnp.float32, minval=0.5, maxval=1.5)
    beta = jax.random.normal(kb, (4 * dim,), jnp.float32) * 0.1
    weight = jax.random.normal(kw, (2 * dim, 4 * dim), jnp.float32) / (4 * dim) ** 0.5

    def reference(x_in):
        """Pure-JAX replica of the PyTorch forward (precise f32 matmul)."""
        xr = x_in.astype(jnp.float32).reshape(B, H, W, dim)
        x0 = xr[:, 0::2, 0::2, :]
        x1 = xr[:, 1::2, 0::2, :]
        x2 = xr[:, 0::2, 1::2, :]
        x3 = xr[:, 1::2, 1::2, :]
        xc = jnp.concatenate([x0, x1, x2, x3], -1).reshape(B, -1, 4 * dim)
        mean = jnp.mean(xc, -1, keepdims=True)
        var = jnp.mean((xc - mean) ** 2, -1, keepdims=True)
        xn = (xc - mean) / jnp.sqrt(var + eps) * gamma + beta
        return jnp.einsum("blk,ko->blo", xn, weight.T,
                          precision=jax.lax.Precision.HIGHEST)

    # (name, io dtype, matmul dtype, tolerance).  Tolerances are generous so
    # the check is robust to generation-dependent default MXU precision for
    # f32 matmuls and to bf16 rounding; structural bugs give O(1) errors.
    configs = [
        ("f32-io/f32-matmul", jnp.float32, jnp.float32, 3e-2),
        ("bf16-io/bf16-matmul", jnp.bfloat16, jnp.bfloat16, 1e-1),
    ]
    for name, io_dtype, mm_dtype, tol in configs:
        xi = x_f32.astype(io_dtype)
        params = prepare_patch_merging_params(gamma, beta, weight,
                                              matmul_dtype=mm_dtype)
        fwd = jax.jit(functools.partial(patch_merging_forward,
                                        input_resolution=(H, W), eps=eps))
        out, out_size = fwd(xi, params)
        out = jax.block_until_ready(out)

        ref = reference(xi)
        assert out.shape == (B, (H // 2) * (W // 2), 2 * dim), out.shape
        oh, ow = out_size
        assert int(oh) == H // 2 and int(ow) == W // 2
        err = float(jnp.max(jnp.abs(out.astype(jnp.float32) - ref)))
        assert err <= tol, f"{name}: max abs err {err} > {tol}"

    print("KERNEL_OK")
</pallas_src>

<mosaic_0001>
module attributes {stable_mosaic.version = 11 : i64} {
  func.func @_patch_merging_kernel(%arg0: i32, %arg1: i32, %arg2: memref<1x8x1x8x128xf32, #tpu.memory_space<vmem>>, %arg3: memref<1x8x1x8x128xf32, #tpu.memory_space<vmem>>, %arg4: memref<2x128x128xf32, #tpu.memory_space<vmem>>, %arg5: memref<2x128xf32, #tpu.memory_space<vmem>>, %arg6: memref<1x64x128xf32, #tpu.memory_space<vmem>>) attributes {dimension_semantics = [#tpu.dimension_semantics<parallel>, #tpu.dimension_semantics<parallel>], iteration_bounds = array<i64: 2, 1>, scalar_prefetch = 0 : i64, scratch_operands = 0 : i64, tpu.core_type = #tpu.core_type<tc>, window_params = [{transform_indices = @transform_0, window_bounds = array<i64: 1, 8, 1, 8, 128>}, {transform_indices = @transform_1, window_bounds = array<i64: 1, 8, 1, 8, 128>}, {pipeline_mode = #tpu.pipeline_mode<synchronous>, transform_indices = @transform_2, window_bounds = array<i64: 2, 128, 128>}, {pipeline_mode = #tpu.pipeline_mode<synchronous>, transform_indices = @transform_3, window_bounds = array<i64: 2, 128>}, {transform_indices = @transform_4, window_bounds = array<i64: 1, 64, 128>}]} {
    %c0 = arith.constant 0 : index
    %c0_0 = arith.constant 0 : index
    %c0_1 = arith.constant 0 : index
    %c0_2 = arith.constant 0 : index
    %c0_3 = arith.constant 0 : index
    %0 = vector.load %arg2[%c0, %c0_0, %c0_1, %c0_2, %c0_3] : memref<1x8x1x8x128xf32, #tpu.memory_space<vmem>>, vector<1x8x1x8x128xf32>
    %1 = vector.shape_cast %0 : vector<1x8x1x8x128xf32> to vector<1x8x8x128xf32>
    %2 = vector.shape_cast %1 : vector<1x8x8x128xf32> to vector<64x128xf32>
    %c0_4 = arith.constant 0 : index
    %c0_5 = arith.constant 0 : index
    %c0_6 = arith.constant 0 : index
    %c0_7 = arith.constant 0 : index
    %c0_8 = arith.constant 0 : index
    %3 = vector.load %arg3[%c0_4, %c0_5, %c0_6, %c0_7, %c0_8] : memref<1x8x1x8x128xf32, #tpu.memory_space<vmem>>, vector<1x8x1x8x128xf32>
    %4 = vector.shape_cast %3 : vector<1x8x1x8x128xf32> to vector<1x8x8x128xf32>
    %5 = vector.shape_cast %4 : vector<1x8x8x128xf32> to vector<64x128xf32>
    %cst = arith.constant dense<0.000000e+00> : vector<64xf32>
    %6 = vector.multi_reduction <add>, %2, %cst [1] : vector<64x128xf32> to vector<64xf32>
    %7 = vector.shape_cast %6 : vector<64xf32> to vector<64x1xf32>
    %cst_9 = arith.constant dense<0.000000e+00> : vector<64xf32>
    %8 = vector.multi_reduction <add>, %5, %cst_9 [1] : vector<64x128xf32> to vector<64xf32>
    %9 = vector.shape_cast %8 : vector<64xf32> to vector<64x1xf32>
    %10 = arith.addf %7, %9 : vector<64x1xf32>
    %cst_10 = arith.constant 3.906250e-03 : f32
    %11 = vector.broadcast %cst_10 : f32 to vector<64x1xf32>
    %12 = arith.mulf %10, %11 : vector<64x1xf32>
    %13 = arith.mulf %2, %2 : vector<64x128xf32>
    %cst_11 = arith.constant dense<0.000000e+00> : vector<64xf32>
    %14 = vector.multi_reduction <add>, %13, %cst_11 [1] : vector<64x128xf32> to vector<64xf32>
    %15 = vector.shape_cast %14 : vector<64xf32> to vector<64x1xf32>
    %16 = arith.mulf %5, %5 : vector<64x128xf32>
    %cst_12 = arith.constant dense<0.000000e+00> : vector<64xf32>
    %17 = vector.multi_reduction <add>, %16, %cst_12 [1] : vector<64x128xf32> to vector<64xf32>
    %18 = vector.shape_cast %17 : vector<64xf32> to vector<64x1xf32>
    %19 = arith.addf %15, %18 : vector<64x1xf32>
    %cst_13 = arith.constant 3.906250e-03 : f32
    %20 = vector.broadcast %cst_13 : f32 to vector<64x1xf32>
    %21 = arith.mulf %19, %20 : vector<64x1xf32>
    %22 = arith.mulf %12, %12 : vector<64x1xf32>
    %23 = arith.subf %21, %22 : vector<64x1xf32>
    %cst_14 = arith.constant 0.000000e+00 : f32
    %24 = vector.broadcast %cst_14 : f32 to vector<64x1xf32>
    %25 = arith.maximumf %23, %24 : vector<64x1xf32>
    %cst_15 = arith.constant 9.99999974E-6 : f32
    %26 = vector.broadcast %cst_15 : f32 to vector<64x1xf32>
    %27 = arith.addf %25, %26 : vector<64x1xf32>
    %28 = math.rsqrt %27 : vector<64x1xf32>
    %c0_16 = arith.constant 0 : index
    %c0_17 = arith.constant 0 : index
    %c0_18 = arith.constant 0 : index
    %29 = vector.load %arg4[%c0_16, %c0_17, %c0_18] : memref<2x128x128xf32, #tpu.memory_space<vmem>>, vector<1x128x128xf32>
    %30 = vector.shape_cast %29 : vector<1x128x128xf32> to vector<128x128xf32>
    %cst_19 = arith.constant dense<0.000000e+00> : vector<64x128xf32>
    %31 = tpu.matmul %2, %30, %cst_19 {dimension_numbers = #tpu.dot_dimension_numbers<[1], [0], [0], [1], [0, 0, 1, 1], [], []>} : vector<64x128xf32>, vector<128x128xf32>, vector<64x128xf32> -> vector<64x128xf32>
    %c1 = arith.constant 1 : index
    %c0_20 = arith.constant 0 : index
    %c0_21 = arith.constant 0 : index
    %32 = vector.load %arg4[%c1, %c0_20, %c0_21] : memref<2x128x128xf32, #tpu.memory_space<vmem>>, vector<1x128x128xf32>
    %33 = vector.shape_cast %32 : vector<1x128x128xf32> to vector<128x128xf32>
    %cst_22 = arith.constant dense<0.000000e+00> : vector<64x128xf32>
    %34 = tpu.matmul %5, %33, %cst_22 {dimension_numbers = #tpu.dot_dimension_numbers<[1], [0], [0], [1], [0, 0, 1, 1], [], []>} : vector<64x128xf32>, vector<128x128xf32>, vector<64x128xf32> -> vector<64x128xf32>
    %35 = arith.addf %31, %34 : vector<64x128xf32>
    %c0_23 = arith.constant 0 : index
    %c0_24 = arith.constant 0 : index
    %36 = vector.load %arg5[%c0_23, %c0_24] : memref<2x128xf32, #tpu.memory_space<vmem>>, vector<2x128xf32>
    %37 = vector.extract_strided_slice %36 {offsets = [0, 0], sizes = [1, 128], strides = [1, 1]} : vector<2x128xf32> to vector<1x128xf32>
    %38 = vector.broadcast %12 : vector<64x1xf32> to vector<64x128xf32>
    %39 = vector.broadcast %37 : vector<1x128xf32> to vector<64x128xf32>
    %40 = arith.mulf %38, %39 : vector<64x128xf32>
    %41 = arith.subf %35, %40 : vector<64x128xf32>
    %42 = vector.broadcast %28 : vector<64x1xf32> to vector<64x128xf32>
    %43 = arith.mulf %41, %42 : vector<64x128xf32>
    %44 = vector.extract_strided_slice %36 {offsets = [1, 0], sizes = [1, 128], strides = [1, 1]} : vector<2x128xf32> to vector<1x128xf32>
    %45 = vector.broadcast %44 : vector<1x128xf32> to vector<64x128xf32>
    %46 = arith.addf %43, %45 : vector<64x128xf32>
    %47 = vector.shape_cast %46 : vector<64x128xf32> to vector<1x64x128xf32>
    %c0_25 = arith.constant 0 : index
    %c0_26 = arith.constant 0 : index
    %c0_27 = arith.constant 0 : index
    %48 = vector.load %arg6[%c0_25, %c0_26, %c0_27] : memref<1x64x128xf32, #tpu.memory_space<vmem>>, vector<1x64x128xf32>
    tpu.vector_store %arg6[%c0_25, %c0_26, %c0_27], %47 {strides = array<i32>} : memref<1x64x128xf32, #tpu.memory_space<vmem>>, vector<1x64x128xf32>,
    return
  }
  func.func @transform_0(%arg0: i32, %arg1: i32) -> (i32, i32, i32, i32, i32) {
    %c0_i32 = arith.constant 0 : i32
    %c0_i32_0 = arith.constant 0 : i32
    %c0_i32_1 = arith.constant 0 : i32
    %c0_i32_2 = arith.constant 0 : i32
    return %arg0, %arg1, %c0_i32, %c0_i32_0, %c0_i32_1 : i32, i32, i32, i32, i32
  }
  func.func @transform_1(%arg0: i32, %arg1: i32) -> (i32, i32, i32, i32, i32) {
    %c1_i32 = arith.constant 1 : i32
    %c0_i32 = arith.constant 0 : i32
    %c0_i32_0 = arith.constant 0 : i32
    %c0_i32_1 = arith.constant 0 : i32
    return %arg0, %arg1, %c1_i32, %c0_i32, %c0_i32_0 : i32, i32, i32, i32, i32
  }
  func.func @transform_2(%arg0: i32, %arg1: i32) -> (i32, i32, i32) {
    %c0_i32 = arith.constant 0 : i32
    %c0_i32_0 = arith.constant 0 : i32
    %c0_i32_1 = arith.constant 0 : i32
    %c0_i32_2 = arith.constant 0 : i32
    return %c0_i32, %c0_i32_0, %c0_i32_1 : i32, i32, i32
  }
  func.func @transform_3(%arg0: i32, %arg1: i32) -> (i32, i32) {
    %c0_i32 = arith.constant 0 : i32
    %c0_i32_0 = arith.constant 0 : i32
    %c0_i32_1 = arith.constant 0 : i32
    return %c0_i32, %c0_i32_0 : i32, i32
  }
  func.func @transform_4(%arg0: i32, %arg1: i32) -> (i32, i32, i32) {
    %c0_i32 = arith.constant 0 : i32
    %c0_i32_0 = arith.constant 0 : i32
    return %arg0, %arg1, %c0_i32 : i32, i32, i32
  }
}

</mosaic_0001>

<llo_original>
// kernel: patch_merging_forward.1
$region0: #{patch_merging_forward.1}
  #allocation0 [shape = 'u32[]', space=smem, size = 0x4, offset = 0x4, fixed_abs, tag = 'smem constant byte address 0x4 - core index']
  #allocation1 [shape = 'u32[144,128]{1,0:T(1,128)}', space=vmem, size = 0x12000, scoped, tag = 'internal scratch']
  %s0 = inlined_call_operand.vmem [shape: f32[2,8,2,8,128], index: 0, kind: input, shape index: {}, may-alias: {0,1}]
  %s1 = inlined_call_operand.vmem [shape: f32[2,8,2,8,128], index: 1, kind: input, shape index: {}, may-alias: {0,1}]
  %s2 = inlined_call_operand.vmem [shape: f32[2,128,128], index: 2, kind: input, shape index: {}]
  %s3 = inlined_call_operand.vmem [shape: f32[2,128], index: 3, kind: input, shape index: {}]
  %s4 = inlined_call_operand.hbm [shape: f32[2,64,128], index: 4, kind: output, shape index: {}]
  %s5 = sld [smem:[#allocation0]]
  $region125: #{patch_merging_forward.1} parent=0
    _
  %s7 = ssub.s32 1, %s5
  %s8 = scalar_select 0, %s7, %s5
  $region1: #{patch_merging_forward.1} parent=0
    #allocation2 [shape = 'u8[65536]{0}', space=vmem, size = 0x10000, scoped, tag = 'input window, operand 0']
    #allocation3 [shape = 'u8[65536]{0}', space=vmem, size = 0x10000, scoped, tag = 'input window, operand 1']
    #allocation4 [shape = 'u8[65536]{0}', space=vmem, size = 0x10000, scoped, tag = 'output window, operand 0']
    #allocation5 [shape = 's32[2]{0}', space=sflag, size = 0x8, scoped, tag = 'scoped memory for patch_merging_forward.1']
    %9 = vsyncpa [#allocation5], 0
    %s10 = scalar_lea.sflag [#allocation5], 1
    %11 = vsyncpa %s10, 0
    loop: start=0, step=1, limit=4
    $region2: #{patch_merging_forward.1} parent=1 // loop_pre_header
      _
    $region3: #{patch_merging_forward.1} parent=1 // loop_header
      %s13 = sphi 0, %s17
      %p14 = scmp.ge.s32.totalorder %s13, 4
      %s20 = sphi 0, %s32
      %s21 = sphi 0, %s28
      %s22 = sphi 0, %s20
      %s23 = sphi 0, %s21
      %s24 = sphi 0, %s22
      %s25 = sphi 0, %s23
      %s37 = sphi 0, %s39
      %s40 = sphi 0, %s37
      %s41 = sphi 0, %s40
      %s57 = sphi 0, %s41
      %s65 = sphi 0, %s67
      %s68 = sphi 0, %s65
      %s69 = sphi 0, %s68
      %s85 = sphi 0, %s69
      %s89 = sphi 0, %s89
      %s91 = sphi 0, %s89
      %s92 = sphi 0, %s91
      %s106 = sphi 0, %s92
      %s110 = sphi 0, %s110
      %s112 = sphi 0, %s110
      %s113 = sphi 0, %s112
      %s127 = sphi 0, %s113
      %s135 = sphi 0, %s137
      %s138 = sphi 0, %s135
      %s139 = sphi 0, %s138
      %s155 = sphi 0, %s139
    $region4: #{patch_merging_forward.1} parent=1 // loop_header_branch
      %16 = sbr.rel (%p14) target = $region8
    $region5: #{patch_merging_forward.1} parent=1 // loop_body
      %s18 = ssub.s32 %s13, 1
      %s19 = ssub.s32 %s13, 2
      %s26 = sadd.s32 1, %s21
      %p27 = scmp.ge.s32.totalorder %s26, 1
      %s28 = scalar_select %p27, 0, %s26
      %s29 = sadd.s32 1, %s20
      %s30 = scalar_select %p27, %s29, %s20
      %p31 = scmp.ge.s32.totalorder %s30, 2
      %s32 = scalar_select %p31, 0, %s30
      %s33 = ssub.s32 %s20, %s32
      %s34 = ssub.s32 %s21, %s28
      %s35 = sor.u32 %s33, %s34
      %p36 = scmp.eq.s32.totalorder %s35, 0
      %s38 = sadd.s32 %s37, 1
      %s39 = scalar_select %p36, %s37, %s38
      %p42 = pneg %p36
      %p43 = scmp.eq.s32.totalorder %s13, 1
      %p44 = por %p42, %p43
      %p45 = scmp.ne.s32.totalorder %s37, %s40
      %p46 = scmp.eq.s32.totalorder %s13, 0
      %p47 = por %p45, %p46
      %p48 = scmp.ne.s32.totalorder %s37, %s40
      %p49 = scmp.eq.s32.totalorder %s18, 1
      %p50 = por %p48, %p49
      %p51 = scmp.ne.s32.totalorder %s40, %s41
      %p52 = scmp.eq.s32.totalorder %s18, 0
      %p53 = por %p51, %p52
      %p54 = scmp.ne.s32.totalorder %s40, %s41
      %p55 = scmp.eq.s32.totalorder %s19, 1
      %p56 = por %p54, %p55
      %p58 = scmp.ne.s32.totalorder %s41, %s57
      %p59 = scmp.eq.s32.totalorder %s19, 0
      %p60 = por %p58, %p59
      %s61 = ssub.s32 %s20, %s32
      %s62 = ssub.s32 %s21, %s28
      %s63 = sor.u32 %s61, %s62
      %p64 = scmp.eq.s32.totalorder %s63, 0
      %s66 = sadd.s32 %s65, 1
      %s67 = scalar_select %p64, %s65, %s66
      %p70 = pneg %p64
      %p71 = scmp.eq.s32.totalorder %s13, 1
      %p72 = por %p70, %p71
      %p73 = scmp.ne.s32.totalorder %s65, %s68
      %p74 = scmp.eq.s32.totalorder %s13, 0
      %p75 = por %p73, %p74
      %p76 = scmp.ne.s32.totalorder %s65, %s68
      %p77 = scmp.eq.s32.totalorder %s18, 1
      %p78 = por %p76, %p77
      %p79 = scmp.ne.s32.totalorder %s68, %s69
      %p80 = scmp.eq.s32.totalorder %s18, 0
      %p81 = por %p79, %p80
      %p82 = scmp.ne.s32.totalorder %s68, %s69
      %p83 = scmp.eq.s32.totalorder %s19, 1
      %p84 = por %p82, %p83
      %p86 = scmp.ne.s32.totalorder %s69, %s85
      %p87 = scmp.eq.s32.totalorder %s19, 0
      %p88 = por %p86, %p87
      %s90 = sadd.s32 %s89, 1
      %p93 = scmp.eq.s32.totalorder %s13, 1
      %p94 = scmp.ne.s32.totalorder %s89, %s91
      %p95 = scmp.eq.s32.totalorder %s13, 0
      %p96 = por %p94, %p95
      %p97 = scmp.ne.s32.totalorder %s89, %s91
      %p98 = scmp.eq.s32.totalorder %s18, 1
      %p99 = por %p97, %p98
      %p100 = scmp.ne.s32.totalorder %s91, %s92
      %p101 = scmp.eq.s32.totalorder %s18, 0
      %p102 = por %p100, %p101
      %p103 = scmp.ne.s32.totalorder %s91, %s92
      %p104 = scmp.eq.s32.totalorder %s19, 1
      %p105 = por %p103, %p104
      %p107 = scmp.ne.s32.totalorder %s92, %s106
      %p108 = scmp.eq.s32.totalorder %s19, 0
      %p109 = por %p107, %p108
      %s111 = sadd.s32 %s110, 1
      %p114 = scmp.eq.s32.totalorder %s13, 1
      %p115 = scmp.ne.s32.totalorder %s110, %s112
      %p116 = scmp.eq.s32.totalorder %s13, 0
      %p117 = por %p115, %p116
      %p118 = scmp.ne.s32.totalorder %s110, %s112
      %p119 = scmp.eq.s32.totalorder %s18, 1
      %p120 = por %p118, %p119
      %p121 = scmp.ne.s32.totalorder %s112, %s113
      %p122 = scmp.eq.s32.totalorder %s18, 0
      %p123 = por %p121, %p122
      %p124 = scmp.ne.s32.totalorder %s112, %s113
      %p125 = scmp.eq.s32.totalorder %s19, 1
      %p126 = por %p124, %p125
      %p128 = scmp.ne.s32.totalorder %s113, %s127
      %p129 = scmp.eq.s32.totalorder %s19, 0
      %p130 = por %p128, %p129
      %s131 = ssub.s32 %s20, %s32
      %s132 = ssub.s32 %s21, %s28
      %s133 = sor.u32 %s131, %s132
      %p134 = scmp.eq.s32.totalorder %s133, 0
      %s136 = sadd.s32 %s135, 1
      %s137 = scalar_select %p134, %s135, %s136
      %p140 = pneg %p134
      %p141 = scmp.eq.s32.totalorder %s13, 1
      %p142 = por %p140, %p141
      %p143 = scmp.ne.s32.totalorder %s135, %s138
      %p144 = scmp.eq.s32.totalorder %s13, 0
      %p145 = por %p143, %p144
      %p146 = scmp.ne.s32.totalorder %s135, %s138
      %p147 = scmp.eq.s32.totalorder %s18, 1
      %p148 = por %p146, %p147
      %p149 = scmp.ne.s32.totalorder %s138, %s139
      %p150 = scmp.eq.s32.totalorder %s18, 0
      %p151 = por %p149, %p150
      %p152 = scmp.ne.s32.totalorder %s138, %s139
      %p153 = scmp.eq.s32.totalorder %s19, 1
      %p154 = por %p152, %p153
      %p156 = scmp.ne.s32.totalorder %s139, %s155
      %p157 = scmp.eq.s32.totalorder %s19, 0
      %p158 = por %p156, %p157
      %p159 = scmp.le.s32.totalorder 1, %s13
      %p160 = scmp.lt.s32.totalorder %s13, 3
      %p161 = pnand %p159, %p160
      %p162 = pneg %p161
      // Predicated region
      $region9: #{patch_merging_forward.1} parent=5 // pred_check
        _
      $region10: #{patch_merging_forward.1} parent=5 // pred_check_branch
        %164 = sbr.rel (%p161) target = $region12
      $region11: #{patch_merging_forward.1} parent=5 // pred_region
        %s165 = ssub.s32 %s13, 1
        // Predicated region
        $region13: #{patch_merging_forward.1} parent=11 // pred_check
          %p166 = pneg %p102
        $region14: #{patch_merging_forward.1} parent=11 // pred_check_branch
          %168 = sbr.rel (%p166) target = $region16
        $region15: #{patch_merging_forward.1} parent=11 // pred_region
          _
        $region16: #{patch_merging_forward.1} parent=11 // pred_fallthru
          _
        // Predicated region
        $region17: #{patch_merging_forward.1} parent=11 // pred_check
          %p169 = pneg %p123
        $region18: #{patch_merging_forward.1} parent=11 // pred_check_branch
          %171 = sbr.rel (%p169) target = $region20
        $region19: #{patch_merging_forward.1} parent=11 // pred_region
          _
        $region20: #{patch_merging_forward.1} parent=11 // pred_fallthru
          _
      $region12: #{patch_merging_forward.1} parent=5 // pred_fallthru
        _
      %p172 = scmp.lt.s32.totalorder %s13, 2
      // Predicated region
      $region21: #{patch_merging_forward.1} parent=5 // pred_check
        %p173 = pneg %p172
      $region22: #{patch_merging_forward.1} parent=5 // pred_check_branch
        %175 = sbr.rel (%p173) target = $region24
      $region23: #{patch_merging_forward.1} parent=5 // pred_region
        // Predicated region
        $region25: #{patch_merging_forward.1} parent=23 // pred_check
          %p176 = pneg %p47
        $region26: #{patch_merging_forward.1} parent=23 // pred_check_branch
          %178 = sbr.rel (%p176) target = $region28
        $region27: #{patch_merging_forward.1} parent=23 // pred_region
          %s179 = sand.u32 %s37, 1
          %s180 = sand.u32 %s37, 1
          %s181 = smul.addr %s180, 64
          %s182 = scalar_lea.vmem [#allocation2], %s181
          %s183 = smul.u32 8, %s21
          %s184 = smul.addr %s183, 2
          %s185 = smul.addr %s20, 16
          %s186 = sadd.s32 %s184, %s185
          %s187 = smul.addr %s186, 8
          %s188 = scalar_lea.vmem %s0, %s187
          // Predicated region
          $region29: #{patch_merging_forward.1} parent=27 // pred_check
            _
          $region30: #{patch_merging_forward.1} parent=27 // pred_check_branch
            %190 = sbr.rel (0) target = $region32
          $region31: #{patch_merging_forward.1} parent=27 // pred_region
            // Predicated region
            $region33: #{patch_merging_forward.1} parent=31 // pred_check
              _
            $region34: #{patch_merging_forward.1} parent=31 // pred_check_branch
              %192 = sbr.rel (0) target = $region36
            $region35: #{patch_merging_forward.1} parent=31 // pred_region
              // Predicated region
              $region48: #{patch_merging_forward.1} parent=35 // pred_check
                _
              $region49: #{patch_merging_forward.1} parent=35 // pred_check_branch
                %222 = sbr.rel (0) target = $region51
              $region50: #{patch_merging_forward.1} parent=35 // pred_region
                loop: start=0, step=1, limit=1
                $region52: #{patch_merging_forward.1} parent=50 // loop_pre_header
                  _
                $region53: #{patch_merging_forward.1} parent=50 // loop_header
                  %s224 = sphi 0, %s228
                  %p225 = scmp.ge.s32.totalorder %s224, 1
                  %s229 = sphi %s188, %s188
                  %s230 = sphi %s182, %s182
                $region54: #{patch_merging_forward.1} parent=50 // loop_header_branch
                  %227 = sbr.rel (%p225) target = $region58
                $region55: #{patch_merging_forward.1} parent=50 // loop_body
                  %v231 = vld [vmem:[%s229] sm:$0xff]
                  %232 = vst [vmem:[%s230] sm:$0xff] %v231
                  %v233 = vld [vmem:[%s229 + $0x10] sm:$0xff]
                  %234 = vst [vmem:[%s230 + $0x8] sm:$0xff] %v233
                  %v235 = vld [vmem:[%s229 + $0x20] sm:$0xff]
                  %236 = vst [vmem:[%s230 + $0x10] sm:$0xff] %v235
                  %v237 = vld [vmem:[%s229 + $0x30] sm:$0xff]
                  %238 = vst [vmem:[%s230 + $0x18] sm:$0xff] %v237
                  %v239 = vld [vmem:[%s229 + $0x40] sm:$0xff]
                  %240 = vst [vmem:[%s230 + $0x20] sm:$0xff] %v239
                  %v241 = vld [vmem:[%s229 + $0x50] sm:$0xff]
                  %242 = vst [vmem:[%s230 + $0x28] sm:$0xff] %v241
                  %v243 = vld [vmem:[%s229 + $0x60] sm:$0xff]
                  %244 = vst [vmem:[%s230 + $0x30] sm:$0xff] %v243
                  %v245 = vld [vmem:[%s229 + $0x70] sm:$0xff]
                  %246 = vst [vmem:[%s230 + $0x38] sm:$0xff] %v245
                $region56: #{patch_merging_forward.1} parent=50 // loop_footer
                  %s228 = sadd.s32 1, %s224
                $region57: #{patch_merging_forward.1} parent=50 // loop_footer_branch
                  %223 = sbr.rel target = $region53
                $region58: #{patch_merging_forward.1} parent=50 // loop_exit
                  _
              $region51: #{patch_merging_forward.1} parent=35 // pred_fallthru
                _
              // Predicated region
              $region59: #{patch_merging_forward.1} parent=35 // pred_check
                _
              $region60: #{patch_merging_forward.1} parent=35 // pred_check_branch
                %248 = sbr.rel target = $region62
              $region61: #{patch_merging_forward.1} parent=35 // pred_region
                _
              $region62: #{patch_merging_forward.1} parent=35 // pred_fallthru
                _
            $region36: #{patch_merging_forward.1} parent=31 // pred_fallthru
              _
            // Predicated region
            $region37: #{patch_merging_forward.1} parent=31 // pred_check
              _
            $region38: #{patch_merging_forward.1} parent=31 // pred_check_branch
              %194 = sbr.rel target = $region40
            $region39: #{patch_merging_forward.1} parent=31 // pred_region
              %s196 = ssub.s32 256, 1
              loop: start=0, step=1, limit=1
              $region41: #{patch_merging_forward.1} parent=39 // loop_pre_header
                _
              $region42: #{patch_merging_forward.1} parent=39 // loop_header
                %s198 = sphi 0, %s202
                %p199 = scmp.ge.s32.totalorder %s198, 1
                %s203 = sphi %s188, %s188
                %s204 = sphi %s182, %s182
              $region43: #{patch_merging_forward.1} parent=39 // loop_header_branch
                %201 = sbr.rel (%p199) target = $region47
              $region44: #{patch_merging_forward.1} parent=39 // loop_body
                %v205 = vld [vmem:[%s203] sm:%s196]
                %206 = vst [vmem:[%s204] sm:%s196] %v205
                %v207 = vld [vmem:[%s203 + $0x10] sm:%s196]
                %208 = vst [vmem:[%s204 + $0x8] sm:%s196] %v207
                %v209 = vld [vmem:[%s203 + $0x20] sm:%s196]
                %210 = vst [vmem:[%s204 + $0x10] sm:%s196] %v209
                %v211 = vld [vmem:[%s203 + $0x30] sm:%s196]
                %212 = vst [vmem:[%s204 + $0x18] sm:%s196] %v211
                %v213 = vld [vmem:[%s203 + $0x40] sm:%s196]
                %214 = vst [vmem:[%s204 + $0x20] sm:%s196] %v213
                %v215 = vld [vmem:[%s203 + $0x50] sm:%s196]
                %216 = vst [vmem:[%s204 + $0x28] sm:%s196] %v215
                %v217 = vld [vmem:[%s203 + $0x60] sm:%s196]
                %218 = vst [vmem:[%s204 + $0x30] sm:%s196] %v217
                %v219 = vld [vmem:[%s203 + $0x70] sm:%s196]
                %220 = vst [vmem:[%s204 + $0x38] sm:%s196] %v219
              $region45: #{patch_merging_forward.1} parent=39 // loop_footer
                %s202 = sadd.s32 1, %s198
              $region46: #{patch_merging_forward.1} parent=39 // loop_footer_branch
                %197 = sbr.rel target = $region42
              $region47: #{patch_merging_forward.1} parent=39 // loop_exit
                _
            $region40: #{patch_merging_forward.1} parent=31 // pred_fallthru
              _
          $region32: #{patch_merging_forward.1} parent=27 // pred_fallthru
            _
          %249 = vnop
        $region28: #{patch_merging_forward.1} parent=23 // pred_fallthru
          _
        // Predicated region
        $region63: #{patch_merging_forward.1} parent=23 // pred_check
          %p250 = pneg %p75
        $region64: #{patch_merging_forward.1} parent=23 // pred_check_branch
          %252 = sbr.rel (%p250) target = $region66
        $region65: #{patch_merging_forward.1} parent=23 // pred_region
          %s253 = sand.u32 %s65, 1
          %s254 = sand.u32 %s65, 1
          %s255 = smul.addr %s254, 64
          %s256 = scalar_lea.vmem [#allocation3], %s255
          %s257 = smul.u32 8, %s21
          %s258 = smul.addr %s257, 2
          %s259 = sadd.s32 1, %s258
          %s260 = smul.addr %s20, 16
          %s261 = sadd.s32 %s259, %s260
          %s262 = smul.addr %s261, 8
          %s263 = scalar_lea.vmem %s1, %s262
          // Predicated region
          $region67: #{patch_merging_forward.1} parent=65 // pred_check
            _
          $region68: #{patch_merging_forward.1} parent=65 // pred_check_branch
            %265 = sbr.rel (0) target = $region70
          $region69: #{patch_merging_forward.1} parent=65 // pred_region
            // Predicated region
            $region71: #{patch_merging_forward.1} parent=69 // pred_check
              _
            $region72: #{patch_merging_forward.1} parent=69 // pred_check_branch
              %267 = sbr.rel (0) target = $region74
            $region73: #{patch_merging_forward.1} parent=69 // pred_region
              // Predicated region
              $region86: #{patch_merging_forward.1} parent=73 // pred_check
                _
              $region87: #{patch_merging_forward.1} parent=73 // pred_check_branch
                %297 = sbr.rel (0) target = $region89
              $region88: #{patch_merging_forward.1} parent=73 // pred_region
                loop: start=0, step=1, limit=1
                $region90: #{patch_merging_forward.1} parent=88 // loop_pre_header
                  _
                $region91: #{patch_merging_forward.1} parent=88 // loop_header
                  %s299 = sphi 0, %s303
                  %p300 = scmp.ge.s32.totalorder %s299, 1
                  %s304 = sphi %s263, %s263
                  %s305 = sphi %s256, %s256
                $region92: #{patch_merging_forward.1} parent=88 // loop_header_branch
                  %302 = sbr.rel (%p300) target = $region96
                $region93: #{patch_merging_forward.1} parent=88 // loop_body
                  %v306 = vld [vmem:[%s304] sm:$0xff]
                  %307 = vst [vmem:[%s305] sm:$0xff] %v306
                  %v308 = vld [vmem:[%s304 + $0x10] sm:$0xff]
                  %309 = vst [vmem:[%s305 + $0x8] sm:$0xff] %v308
                  %v310 = vld [vmem:[%s304 + $0x20] sm:$0xff]
                  %311 = vst [vmem:[%s305 + $0x10] sm:$0xff] %v310
                  %v312 = vld [vmem:[%s304 + $0x30] sm:$0xff]
                  %313 = vst [vmem:[%s305 + $0x18] sm:$0xff] %v312
                  %v314 = vld [vmem:[%s304 + $0x40] sm:$0xff]
                  %315 = vst [vmem:[%s305 + $0x20] sm:$0xff] %v314
                  %v316 = vld [vmem:[%s304 + $0x50] sm:$0xff]
                  %317 = vst [vmem:[%s305 + $0x28] sm:$0xff] %v316
                  %v318 = vld [vmem:[%s304 + $0x60] sm:$0xff]
                  %319 = vst [vmem:[%s305 + $0x30] sm:$0xff] %v318
                  %v320 = vld [vmem:[%s304 + $0x70] sm:$0xff]
                  %321 = vst [vmem:[%s305 + $0x38] sm:$0xff] %v320
                $region94: #{patch_merging_forward.1} parent=88 // loop_footer
                  %s303 = sadd.s32 1, %s299
                $region95: #{patch_merging_forward.1} parent=88 // loop_footer_branch
                  %298 = sbr.rel target = $region91
                $region96: #{patch_merging_forward.1} parent=88 // loop_exit
                  _
              $region89: #{patch_merging_forward.1} parent=73 // pred_fallthru
                _
              // Predicated region
              $region97: #{patch_merging_forward.1} parent=73 // pred_check
                _
              $region98: #{patch_merging_forward.1} parent=73 // pred_check_branch
                %323 = sbr.rel target = $region100
              $region99: #{patch_merging_forward.1} parent=73 // pred_region
                _
              $region100: #{patch_merging_forward.1} parent=73 // pred_fallthru
                _
            $region74: #{patch_merging_forward.1} parent=69 // pred_fallthru
              _
            // Predicated region
            $region75: #{patch_merging_forward.1} parent=69 // pred_check
              _
            $region76: #{patch_merging_forward.1} parent=69 // pred_check_branch
              %269 = sbr.rel target = $region78
            $region77: #{patch_merging_forward.1} parent=69 // pred_region
              %s271 = ssub.s32 256, 1
              loop: start=0, step=1, limit=1
              $region79: #{patch_merging_forward.1} parent=77 // loop_pre_header
                _
              $region80: #{patch_merging_forward.1} parent=77 // loop_header
                %s273 = sphi 0, %s277
                %p274 = scmp.ge.s32.totalorder %s273, 1
                %s278 = sphi %s263, %s263
                %s279 = sphi %s256, %s256
              $region81: #{patch_merging_forward.1} parent=77 // loop_header_branch
                %276 = sbr.rel (%p274) target = $region85
              $region82: #{patch_merging_forward.1} parent=77 // loop_body
                %v280 = vld [vmem:[%s278] sm:%s271]
                %281 = vst [vmem:[%s279] sm:%s271] %v280
                %v282 = vld [vmem:[%s278 + $0x10] sm:%s271]
                %283 = vst [vmem:[%s279 + $0x8] sm:%s271] %v282
                %v284 = vld [vmem:[%s278 + $0x20] sm:%s271]
                %285 = vst [vmem:[%s279 + $0x10] sm:%s271] %v284
                %v286 = vld [vmem:[%s278 + $0x30] sm:%s271]
                %287 = vst [vmem:[%s279 + $0x18] sm:%s271] %v286
                %v288 = vld [vmem:[%s278 + $0x40] sm:%s271]
                %289 = vst [vmem:[%s279 + $0x20] sm:%s271] %v288
                %v290 = vld [vmem:[%s278 + $0x50] sm:%s271]
                %291 = vst [vmem:[%s279 + $0x28] sm:%s271] %v290
                %v292 = vld [vmem:[%s278 + $0x60] sm:%s271]
                %293 = vst [vmem:[%s279 + $0x30] sm:%s271] %v292
                %v294 = vld [vmem:[%s278 + $0x70] sm:%s271]
                %295 = vst [vmem:[%s279 + $0x38] sm:%s271] %v294
              $region83: #{patch_merging_forward.1} parent=77 // loop_footer
                %s277 = sadd.s32 1, %s273
              $region84: #{patch_merging_forward.1} parent=77 // loop_footer_branch
                %272 = sbr.rel target = $region80
              $region85: #{patch_merging_forward.1} parent=77 // loop_exit
                _
            $region78: #{patch_merging_forward.1} parent=69 // pred_fallthru
              _
          $region70: #{patch_merging_forward.1} parent=65 // pred_fallthru
            _
          %324 = vnop
        $region66: #{patch_merging_forward.1} parent=23 // pred_fallthru
          _
      $region24: #{patch_merging_forward.1} parent=5 // pred_fallthru
        _
      %p325 = scmp.le.s32.totalorder 1, %s13
      %p326 = scmp.lt.s32.totalorder %s13, 3
      %p327 = pnand %p325, %p326
      %p328 = pneg %p327
      // Predicated region
      $region101: #{patch_merging_forward.1} parent=5 // pred_check
        _
      $region102: #{patch_merging_forward.1} parent=5 // pred_check_branch
        %330 = sbr.rel (%p327) target = $region104
      $region103: #{patch_merging_forward.1} parent=5 // pred_region
        %s331 = ssub.s32 %s13, 1
        %s332 = sand.u32 %s40, 1
        %s333 = sand.u32 %s40, 1
        %s334 = smul.addr %s333, 64
        %s335 = scalar_lea.vmem [#allocation2], %s334
        // Predicated region
        $region105: #{patch_merging_forward.1} parent=103 // pred_check
          %p336 = pneg %p53
        $region106: #{patch_merging_forward.1} parent=103 // pred_check_branch
          %338 = sbr.rel (%p336) target = $region108
        $region107: #{patch_merging_forward.1} parent=103 // pred_region
          _
        $region108: #{patch_merging_forward.1} parent=103 // pred_fallthru
          _
        %s339 = sand.u32 %s68, 1
        %s340 = sand.u32 %s68, 1
        %s341 = smul.addr %s340, 64
        %s342 = scalar_lea.vmem [#allocation3], %s341
        // Predicated region
        $region109: #{patch_merging_forward.1} parent=103 // pred_check
          %p343 = pneg %p81
        $region110: #{patch_merging_forward.1} parent=103 // pred_check_branch
          %345 = sbr.rel (%p343) target = $region112
        $region111: #{patch_merging_forward.1} parent=103 // pred_region
          _
        $region112: #{patch_merging_forward.1} parent=103 // pred_fallthru
          _
        %s346 = sand.u32 %s40, 1
        %s347 = sand.u32 %s40, 1
        %s348 = smul.addr %s347, 64
        %s349 = scalar_lea.vmem [#allocation2], %s348
        %p350 = pneg %p53
        %p351 = pneg %p50
        %s352 = sand.u32 %s68, 1
        %s353 = sand.u32 %s68, 1
        %s354 = smul.addr %s353, 64
        %s355 = scalar_lea.vmem [#allocation3], %s354
        %p356 = pneg %p81
        %p357 = pneg %p78
        %p358 = pneg %p102
        %p359 = pneg %p99
        %p360 = pneg %p123
        %p361 = pneg %p120
        %p362 = pneg %p151
        %p363 = pneg %p148
        %s364 = sand.u32 %s138, 1
        %s365 = scalar_lea.sflag [#allocation5], %s364
        %s366 = sand.u32 %s138, 1
        %s367 = smul.addr %s366, 64
        %s368 = scalar_lea.vmem [#allocation4], %s367
        %s369 = smul.u32 8, %s23
        %s370 = smul.u32 8, %s23
        %s371 = smul.u32 8, %s23
        %v372 = vld [vmem:[%s335] sm:$0xff]
        %v373 = vld [vmem:[%s335 + $0x8] sm:$0xff]
        %v374 = vld [vmem:[%s335 + $0x10] sm:$0xff]
        %v375 = vld [vmem:[%s335 + $0x18] sm:$0xff]
        %v376 = vld [vmem:[%s335 + $0x20] sm:$0xff]
        %v377 = vld [vmem:[%s335 + $0x28] sm:$0xff]
        %v378 = vld [vmem:[%s335 + $0x30] sm:$0xff]
        %v379 = vld [vmem:[%s335 + $0x38] sm:$0xff]
        %v380 = vld [vmem:[%s342] sm:$0xff]
        %v381 = vld [vmem:[%s342 + $0x8] sm:$0xff]
        %v382 = vld [vmem:[%s342 + $0x10] sm:$0xff]
        %v383 = vld [vmem:[%s342 + $0x18] sm:$0xff]
        %v384 = vld [vmem:[%s342 + $0x20] sm:$0xff]
        %v385 = vld [vmem:[%s342 + $0x28] sm:$0xff]
        %v386 = vld [vmem:[%s342 + $0x30] sm:$0xff]
        %v387 = vld [vmem:[%s342 + $0x38] sm:$0xff]
        %388 = vadd.xlane.f32.xlu0 %v372
        %v389 = vpop.xlane.xlu0 %388
        %390 = vadd.xlane.f32.xlu0 %v373
        %v391 = vpop.xlane.xlu0 %390
        %392 = vadd.xlane.f32.xlu0 %v374
        %v393 = vpop.xlane.xlu0 %392
        %394 = vadd.xlane.f32.xlu0 %v375
        %v395 = vpop.xlane.xlu0 %394
        %396 = vadd.xlane.f32.xlu0 %v376
        %v397 = vpop.xlane.xlu0 %396
        %398 = vadd.xlane.f32.xlu0 %v377
        %v399 = vpop.xlane.xlu0 %398
        %400 = vadd.xlane.f32.xlu0 %v378
        %v401 = vpop.xlane.xlu0 %400
        %402 = vadd.xlane.f32.xlu0 %v379
        %v403 = vpop.xlane.xlu0 %402
        %404 = vadd.xlane.f32.xlu0 %v380
        %v405 = vpop.xlane.xlu0 %404
        %406 = vadd.xlane.f32.xlu0 %v381
        %v407 = vpop.xlane.xlu0 %406
        %408 = vadd.xlane.f32.xlu0 %v382
        %v409 = vpop.xlane.xlu0 %408
        %410 = vadd.xlane.f32.xlu0 %v383
        %v411 = vpop.xlane.xlu0 %410
        %412 = vadd.xlane.f32.xlu0 %v384
        %v413 = vpop.xlane.xlu0 %412
        %414 = vadd.xlane.f32.xlu0 %v385
        %v415 = vpop.xlane.xlu0 %414
        %416 = vadd.xlane.f32.xlu0 %v386
        %v417 = vpop.xlane.xlu0 %416
        %418 = vadd.xlane.f32.xlu0 %v387
        %v419 = vpop.xlane.xlu0 %418
        %v420 = vadd.f32 %v389, %v405
        %v421 = vadd.f32 %v391, %v407
        %v422 = vadd.f32 %v393, %v409
        %v423 = vadd.f32 %v395, %v411
        %v424 = vadd.f32 %v397, %v413
        %v425 = vadd.f32 %v399, %v415
        %v426 = vadd.f32 %v401, %v417
        %v427 = vadd.f32 %v403, %v419
        %v428 = vmul.f32 %v420, 0.00390625
        %v429 = vmul.f32 %v421, 0.00390625
        %v430 = vmul.f32 %v422, 0.00390625
        %v431 = vmul.f32 %v423, 0.00390625
        %v432 = vmul.f32 %v424, 0.00390625
        %v433 = vmul.f32 %v425, 0.00390625
        %v434 = vmul.f32 %v426, 0.00390625
        %v435 = vmul.f32 %v427, 0.00390625
        %v436 = vmul.f32 %v372, %v372
        %v437 = vmul.f32 %v373, %v373
        %v438 = vmul.f32 %v374, %v374
        %v439 = vmul.f32 %v375, %v375
        %v440 = vmul.f32 %v376, %v376
        %v441 = vmul.f32 %v377, %v377
        %v442 = vmul.f32 %v378, %v378
        %v443 = vmul.f32 %v379, %v379
        %444 = vadd.xlane.f32.xlu0 %v436
        %v445 = vpop.xlane.xlu0 %444
        %446 = vadd.xlane.f32.xlu0 %v437
        %v447 = vpop.xlane.xlu0 %446
        %448 = vadd.xlane.f32.xlu0 %v438
        %v449 = vpop.xlane.xlu0 %448
        %450 = vadd.xlane.f32.xlu0 %v439
        %v451 = vpop.xlane.xlu0 %450
        %452 = vadd.xlane.f32.xlu0 %v440
        %v453 = vpop.xlane.xlu0 %452
        %454 = vadd.xlane.f32.xlu0 %v441
        %v455 = vpop.xlane.xlu0 %454
        %456 = vadd.xlane.f32.xlu0 %v442
        %v457 = vpop.xlane.xlu0 %456
        %458 = vadd.xlane.f32.xlu0 %v443
        %v459 = vpop.xlane.xlu0 %458
        %v460 = vmul.f32 %v380, %v380
        %v461 = vmul.f32 %v381, %v381
        %v462 = vmul.f32 %v382, %v382
        %v463 = vmul.f32 %v383, %v383
        %v464 = vmul.f32 %v384, %v384
        %v465 = vmul.f32 %v385, %v385
        %v466 = vmul.f32 %v386, %v386
        %v467 = vmul.f32 %v387, %v387
        %468 = vadd.xlane.f32.xlu0 %v460
        %v469 = vpop.xlane.xlu0 %468
        %470 = vadd.xlane.f32.xlu0 %v461
        %v471 = vpop.xlane.xlu0 %470
        %472 = vadd.xlane.f32.xlu0 %v462
        %v473 = vpop.xlane.xlu0 %472
        %474 = vadd.xlane.f32.xlu0 %v463
        %v475 = vpop.xlane.xlu0 %474
        %476 = vadd.xlane.f32.xlu0 %v464
        %v477 = vpop.xlane.xlu0 %476
        %478 = vadd.xlane.f32.xlu0 %v465
        %v479 = vpop.xlane.xlu0 %478
        %480 = vadd.xlane.f32.xlu0 %v466
        %v481 = vpop.xlane.xlu0 %480
        %482 = vadd.xlane.f32.xlu0 %v467
        %v483 = vpop.xlane.xlu0 %482
        %v484 = vadd.f32 %v445, %v469
        %v485 = vadd.f32 %v447, %v471
        %v486 = vadd.f32 %v449, %v473
        %v487 = vadd.f32 %v451, %v475
        %v488 = vadd.f32 %v453, %v477
        %v489 = vadd.f32 %v455, %v479
        %v490 = vadd.f32 %v457, %v481
        %v491 = vadd.f32 %v459, %v483
        %v492 = vmul.f32 %v484, 0.00390625
        %v493 = vmul.f32 %v485, 0.00390625
        %v494 = vmul.f32 %v486, 0.00390625
        %v495 = vmul.f32 %v487, 0.00390625
        %v496 = vmul.f32 %v488, 0.00390625
        %v497 = vmul.f32 %v489, 0.00390625
        %v498 = vmul.f32 %v490, 0.00390625
        %v499 = vmul.f32 %v491, 0.00390625
        %v500 = vmul.f32 %v428, %v428
        %v501 = vmul.f32 %v429, %v429
        %v502 = vmul.f32 %v430, %v430
        %v503 = vmul.f32 %v431, %v431
        %v504 = vmul.f32 %v432, %v432
        %v505 = vmul.f32 %v433, %v433
        %v506 = vmul.f32 %v434, %v434
        %v507 = vmul.f32 %v435, %v435
        %v508 = vsub.f32 %v492, %v500
        %v509 = vsub.f32 %v493, %v501
        %v510 = vsub.f32 %v494, %v502
        %v511 = vsub.f32 %v495, %v503
        %v512 = vsub.f32 %v496, %v504
        %v513 = vsub.f32 %v497, %v505
        %v514 = vsub.f32 %v498, %v506
        %v515 = vsub.f32 %v499, %v507
        %v516 = vmax.f32 %v508, 0.0
        %v517 = vmax.f32 %v509, 0.0
        %v518 = vmax.f32 %v510, 0.0
        %v519 = vmax.f32 %v511, 0.0
        %v520 = vmax.f32 %v512, 0.0
        %v521 = vmax.f32 %v513, 0.0
        %v522 = vmax.f32 %v514, 0.0
        %v523 = vmax.f32 %v515, 0.0
        %v524 = vadd.f32 %v516, 1e-05
        %v525 = vadd.f32 %v517, 1e-05
        %v526 = vadd.f32 %v518, 1e-05
        %v527 = vadd.f32 %v519, 1e-05
        %v528 = vadd.f32 %v520, 1e-05
        %v529 = vadd.f32 %v521, 1e-05
        %v530 = vadd.f32 %v522, 1e-05
        %v531 = vadd.f32 %v523, 1e-05
        %v532 = vrsqrt.pop %v524
        %v533 = vrsqrt.pop %v525
        %v534 = vrsqrt.pop %v526
        %v535 = vrsqrt.pop %v527
        %v536 = vrsqrt.pop %v528
        %v537 = vrsqrt.pop %v529
        %v538 = vrsqrt.pop %v530
        %v539 = vrsqrt.pop %v531
        %v540 = vld [vmem:[%s2] sm:$0xff]
        %v541 = vld [vmem:[%s2 + $0x8] sm:$0xff]
        %v542 = vld [vmem:[%s2 + $0x10] sm:$0xff]
        %v543 = vld [vmem:[%s2 + $0x18] sm:$0xff]
        %v544 = vld [vmem:[%s2 + $0x20] sm:$0xff]
        %v545 = vld [vmem:[%s2 + $0x28] sm:$0xff]
        %v546 = vld [vmem:[%s2 + $0x30] sm:$0xff]
        %v547 = vld [vmem:[%s2 + $0x38] sm:$0xff]
        %v548 = vld [vmem:[%s2 + $0x40] sm:$0xff]
        %v549 = vld [vmem:[%s2 + $0x48] sm:$0xff]
        %v550 = vld [vmem:[%s2 + $0x50] sm:$0xff]
        %v551 = vld [vmem:[%s2 + $0x58] sm:$0xff]
        %v552 = vld [vmem:[%s2 + $0x60] sm:$0xff]
        %v553 = vld [vmem:[%s2 + $0x68] sm:$0xff]
        %v554 = vld [vmem:[%s2 + $0x70] sm:$0xff]
        %v555 = vld [vmem:[%s2 + $0x78] sm:$0xff]
        %s556 = scalar_lea.vmem %s2, 128
        %v557 = vld [vmem:[%s556] sm:$0xff]
        %v558 = vld [vmem:[%s556 + $0x8] sm:$0xff]
        %v559 = vld [vmem:[%s556 + $0x10] sm:$0xff]
        %v560 = vld [vmem:[%s556 + $0x18] sm:$0xff]
        %v561 = vld [vmem:[%s556 + $0x20] sm:$0xff]
        %v562 = vld [vmem:[%s556 + $0x28] sm:$0xff]
        %v563 = vld [vmem:[%s556 + $0x30] sm:$0xff]
        %v564 = vld [vmem:[%s556 + $0x38] sm:$0xff]
        %v565 = vld [vmem:[%s556 + $0x40] sm:$0xff]
        %v566 = vld [vmem:[%s556 + $0x48] sm:$0xff]
        %v567 = vld [vmem:[%s556 + $0x50] sm:$0xff]
        %v568 = vld [vmem:[%s556 + $0x58] sm:$0xff]
        %v569 = vld [vmem:[%s556 + $0x60] sm:$0xff]
        %v570 = vld [vmem:[%s556 + $0x68] sm:$0xff]
        %v571 = vld [vmem:[%s556 + $0x70] sm:$0xff]
        %v572 = vld [vmem:[%s556 + $0x78] sm:$0xff]
        %573 = vmatprep.subr.mxu0 0.0
        %574 = vmatpush1.msra.mxu0 %v572
        %575 = vmatprep.subr.mxu0 0.0
        %576 = vmatpush1.msra.mxu0 %v571
        %577 = vmatprep.subr.mxu0 0.0
        %578 = vmatpush1.msra.mxu0 %v570
        %579 = vmatprep.subr.mxu0 0.0
        %580 = vmatpush1.msra.mxu0 %v569
        %581 = vmatprep.subr.mxu0 0.0
        %582 = vmatpush1.msra.mxu0 %v568
        %583 = vmatprep.subr.mxu0 0.0
        %584 = vmatpush1.msra.mxu0 %v567
        %585 = vmatprep.subr.mxu0 0.0
        %586 = vmatpush1.msra.mxu0 %v566
        %587 = vmatprep.subr.mxu0 0.0
        %588 = vmatpush1.msra.mxu0 %v565
        %589 = vmatprep.subr.mxu0 0.0
        %590 = vmatpush1.msra.mxu0 %v564
        %591 = vmatprep.subr.mxu0 0.0
        %592 = vmatpush1.msra.mxu0 %v563
        %593 = vmatprep.subr.mxu0 0.0
        %594 = vmatpush1.msra.mxu0 %v562
        %595 = vmatprep.subr.mxu0 0.0
        %596 = vmatpush1.msra.mxu0 %v561
        %597 = vmatprep.subr.mxu0 0.0
        %598 = vmatpush1.msra.mxu0 %v560
        %599 = vmatprep.subr.mxu0 0.0
        %600 = vmatpush1.msra.mxu0 %v559
        %601 = vmatprep.subr.mxu0 0.0
        %602 = vmatpush1.msra.mxu0 %v558
        %603 = vmatprep.subr.mxu0 0.0
        %604 = vmatpush1.msra.mxu0 %v557
        %605 = vmatprep.subr.mxu0 0.0
        %606 = vmatpush2.msra.mxu0 0.0
        %607 = vmatprep.subr.mxu0 0.0
        %608 = vmatpush2.msra.mxu0 0.0
        %609 = vmatprep.subr.mxu0 0.0
        %610 = vmatpush2.msra.mxu0 0.0
        %611 = vmatprep.subr.mxu0 0.0
        %612 = vmatpush2.msra.mxu0 0.0
        %613 = vmatprep.subr.mxu0 0.0
        %614 = vmatpush2.msra.mxu0 0.0
        %615 = vmatprep.subr.mxu0 0.0
        %616 = vmatpush2.msra.mxu0 0.0
        %617 = vmatprep.subr.mxu0 0.0
        %618 = vmatpush2.msra.mxu0 0.0
        %619 = vmatprep.subr.mxu0 0.0
        %620 = vmatpush2.msra.mxu0 0.0
        %621 = vmatprep.subr.mxu0 0.0
        %622 = vmatpush2.msra.mxu0 0.0
        %623 = vmatprep.subr.mxu0 0.0
        %624 = vmatpush2.msra.mxu0 0.0
        %625 = vmatprep.subr.mxu0 0.0
        %626 = vmatpush2.msra.mxu0 0.0
        %627 = vmatprep.subr.mxu0 0.0
        %628 = vmatpush2.msra.mxu0 0.0
        %629 = vmatprep.subr.mxu0 0.0
        %630 = vmatpush2.msra.mxu0 0.0
        %631 = vmatprep.subr.mxu0 0.0
        %632 = vmatpush2.msra.mxu0 0.0
        %633 = vmatprep.subr.mxu0 0.0
        %634 = vmatpush2.msra.mxu0 0.0
        %635 = vmatprep.subr.mxu0 0.0
        %636 = vmatpush2.msra.mxu0 0.0
        %637 = vmatprep.mubr.f32.mxu0 0.0
        %638 = vmatmul.mubr.f32.gmra.mxu0 %v380
        %v639 = vpop.f32.mrf.mxu0
        %v640 = vadd.f32 0.0, %v639
        %v641 = vpop.f32.mrf.mxu0
        %642 = vmatprep.mubr.f32.mxu0 0.0
        %643 = vmatmul.mubr.f32.gmra.mxu0 %v381
        %v644 = vpop.f32.mrf.mxu0
        %v645 = vadd.f32 0.0, %v644
        %v646 = vpop.f32.mrf.mxu0
        %647 = vmatprep.mubr.f32.mxu0 0.0
        %648 = vmatmul.mubr.f32.gmra.mxu0 %v382
        %v649 = vpop.f32.mrf.mxu0
        %v650 = vadd.f32 0.0, %v649
        %v651 = vpop.f32.mrf.mxu0
        %652 = vmatprep.mubr.f32.mxu0 0.0
        %653 = vmatmul.mubr.f32.gmra.mxu0 %v383
        %v654 = vpop.f32.mrf.mxu0
        %v655 = vadd.f32 0.0, %v654
        %v656 = vpop.f32.mrf.mxu0
        %657 = vmatprep.mubr.f32.mxu0 0.0
        %658 = vmatmul.mubr.f32.gmra.mxu0 %v384
        %v659 = vpop.f32.mrf.mxu0
        %v660 = vadd.f32 0.0, %v659
        %v661 = vpop.f32.mrf.mxu0
        %662 = vmatprep.mubr.f32.mxu0 0.0
        %663 = vmatmul.mubr.f32.gmra.mxu0 %v385
        %v664 = vpop.f32.mrf.mxu0
        %v665 = vadd.f32 0.0, %v664
        %v666 = vpop.f32.mrf.mxu0
        %667 = vmatprep.mubr.f32.mxu0 0.0
        %668 = vmatmul.mubr.f32.gmra.mxu0 %v386
        %v669 = vpop.f32.mrf.mxu0
        %v670 = vadd.f32 0.0, %v669
        %v671 = vpop.f32.mrf.mxu0
        %672 = vmatprep.mubr.f32.mxu0 0.0
        %673 = vmatmul.mubr.f32.gmra.mxu0 %v387
        %v674 = vpop.f32.mrf.mxu0
        %v675 = vadd.f32 0.0, %v674
        %v676 = vpop.f32.mrf.mxu0
        %677 = vdwg.mxu0
        %678 = vmatprep.subr.mxu0 0.0
        %679 = vmatpush1.msra.mxu0 %v555
        %680 = vmatprep.subr.mxu0 0.0
        %681 = vmatpush1.msra.mxu0 %v554
        %682 = vmatprep.subr.mxu0 0.0
        %683 = vmatpush1.msra.mxu0 %v553
        %684 = vmatprep.subr.mxu0 0.0
        %685 = vmatpush1.msra.mxu0 %v552
        %686 = vmatprep.subr.mxu0 0.0
        %687 = vmatpush1.msra.mxu0 %v551
        %688 = vmatprep.subr.mxu0 0.0
        %689 = vmatpush1.msra.mxu0 %v550
        %690 = vmatprep.subr.mxu0 0.0
        %691 = vmatpush1.msra.mxu0 %v549
        %692 = vmatprep.subr.mxu0 0.0
        %693 = vmatpush1.msra.mxu0 %v548
        %694 = vmatprep.subr.mxu0 0.0
        %695 = vmatpush1.msra.mxu0 %v547
        %696 = vmatprep.subr.mxu0 0.0
        %697 = vmatpush1.msra.mxu0 %v546
        %698 = vmatprep.subr.mxu0 0.0
        %699 = vmatpush1.msra.mxu0 %v545
        %700 = vmatprep.subr.mxu0 0.0
        %701 = vmatpush1.msra.mxu0 %v544
        %702 = vmatprep.subr.mxu0 0.0
        %703 = vmatpush1.msra.mxu0 %v543
        %704 = vmatprep.subr.mxu0 0.0
        %705 = vmatpush1.msra.mxu0 %v542
        %706 = vmatprep.subr.mxu0 0.0
        %707 = vmatpush1.msra.mxu0 %v541
        %708 = vmatprep.subr.mxu0 0.0
        %709 = vmatpush1.msra.mxu0 %v540
        %710 = vmatprep.subr.mxu0 0.0
        %711 = vmatpush2.msra.mxu0 0.0
        %712 = vmatprep.subr.mxu0 0.0
        %713 = vmatpush2.msra.mxu0 0.0
        %714 = vmatprep.subr.mxu0 0.0
        %715 = vmatpush2.msra.mxu0 0.0
        %716 = vmatprep.subr.mxu0 0.0
        %717 = vmatpush2.msra.mxu0 0.0
        %718 = vmatprep.subr.mxu0 0.0
        %719 = vmatpush2.msra.mxu0 0.0
        %720 = vmatprep.subr.mxu0 0.0
        %721 = vmatpush2.msra.mxu0 0.0
        %722 = vmatprep.subr.mxu0 0.0
        %723 = vmatpush2.msra.mxu0 0.0
        %724 = vmatprep.subr.mxu0 0.0
        %725 = vmatpush2.msra.mxu0 0.0
        %726 = vmatprep.subr.mxu0 0.0
        %727 = vmatpush2.msra.mxu0 0.0
        %728 = vmatprep.subr.mxu0 0.0
        %729 = vmatpush2.msra.mxu0 0.0
        %730 = vmatprep.subr.mxu0 0.0
        %731 = vmatpush2.msra.mxu0 0.0
        %732 = vmatprep.subr.mxu0 0.0
        %733 = vmatpush2.msra.mxu0 0.0
        %734 = vmatprep.subr.mxu0 0.0
        %735 = vmatpush2.msra.mxu0 0.0
        %736 = vmatprep.subr.mxu0 0.0
        %737 = vmatpush2.msra.mxu0 0.0
        %738 = vmatprep.subr.mxu0 0.0
        %739 = vmatpush2.msra.mxu0 0.0
        %740 = vmatprep.subr.mxu0 0.0
        %741 = vmatpush2.msra.mxu0 0.0
        %742 = vmatprep.mubr.f32.mxu0 0.0
        %743 = vmatmul.mubr.f32.gmra.mxu0 %v372
        %v744 = vpop.f32.mrf.mxu0
        %v745 = vadd.f32 %v640, %v744
        %v746 = vpop.f32.mrf.mxu0
        %747 = vmatprep.mubr.f32.mxu0 0.0
        %748 = vmatmul.mubr.f32.gmra.mxu0 %v373
        %v749 = vpop.f32.mrf.mxu0
        %v750 = vadd.f32 %v645, %v749
        %v751 = vpop.f32.mrf.mxu0
        %752 = vmatprep.mubr.f32.mxu0 0.0
        %753 = vmatmul.mubr.f32.gmra.mxu0 %v374
        %v754 = vpop.f32.mrf.mxu0
        %v755 = vadd.f32 %v650, %v754
        %v756 = vpop.f32.mrf.mxu0
        %757 = vmatprep.mubr.f32.mxu0 0.0
        %758 = vmatmul.mubr.f32.gmra.mxu0 %v375
        %v759 = vpop.f32.mrf.mxu0
        %v760 = vadd.f32 %v655, %v759
        %v761 = vpop.f32.mrf.mxu0
        %762 = vmatprep.mubr.f32.mxu0 0.0
        %763 = vmatmul.mubr.f32.gmra.mxu0 %v376
        %v764 = vpop.f32.mrf.mxu0
        %v765 = vadd.f32 %v660, %v764
        %v766 = vpop.f32.mrf.mxu0
        %767 = vmatprep.mubr.f32.mxu0 0.0
        %768 = vmatmul.mubr.f32.gmra.mxu0 %v377
        %v769 = vpop.f32.mrf.mxu0
        %v770 = vadd.f32 %v665, %v769
        %v771 = vpop.f32.mrf.mxu0
        %772 = vmatprep.mubr.f32.mxu0 0.0
        %773 = vmatmul.mubr.f32.gmra.mxu0 %v378
        %v774 = vpop.f32.mrf.mxu0
        %v775 = vadd.f32 %v670, %v774
        %v776 = vpop.f32.mrf.mxu0
        %777 = vmatprep.mubr.f32.mxu0 0.0
        %778 = vmatmul.mubr.f32.gmra.mxu0 %v379
        %v779 = vpop.f32.mrf.mxu0
        %v780 = vadd.f32 %v675, %v779
        %v781 = vpop.f32.mrf.mxu0
        %782 = vdwg.mxu0
        %v783 = vld [vmem:[%s3] sm:$0x3]
        %v784 = vlaneseq
        %v785 = vshrl.u32 %v784, 7
        %v786 = vsub.s32 0, %v785
        %v787 = vrot.slane %v783, %v786
        %v788 = vmul.f32 %v428, %v787
        %v789 = vmul.f32 %v429, %v787
        %v790 = vmul.f32 %v430, %v787
        %v791 = vmul.f32 %v431, %v787
        %v792 = vmul.f32 %v432, %v787
        %v793 = vmul.f32 %v433, %v787
        %v794 = vmul.f32 %v434, %v787
        %v795 = vmul.f32 %v435, %v787
        %v796 = vsub.f32 %v745, %v788
        %v797 = vsub.f32 %v750, %v789
        %v798 = vsub.f32 %v755, %v790
        %v799 = vsub.f32 %v760, %v791
        %v800 = vsub.f32 %v765, %v792
        %v801 = vsub.f32 %v770, %v793
        %v802 = vsub.f32 %v775, %v794
        %v803 = vsub.f32 %v780, %v795
        %v804 = vmul.f32 %v796, %v532
        %v805 = vmul.f32 %v797, %v533
        %v806 = vmul.f32 %v798, %v534
        %v807 = vmul.f32 %v799, %v535
        %v808 = vmul.f32 %v800, %v536
        %v809 = vmul.f32 %v801, %v537
        %v810 = vmul.f32 %v802, %v538
        %v811 = vmul.f32 %v803, %v539
        %v812 = vlaneseq
        %v813 = vshrl.u32 %v812, 7
        %v814 = vsub.s32 1, %v813
        %v815 = vrot.slane %v783, %v814
        %v816 = vadd.f32 %v804, %v815
        %v817 = vadd.f32 %v805, %v815
        %v818 = vadd.f32 %v806, %v815
        %v819 = vadd.f32 %v807, %v815
        %v820 = vadd.f32 %v808, %v815
        %v821 = vadd.f32 %v809, %v815
        %v822 = vadd.f32 %v810, %v815
        %v823 = vadd.f32 %v811, %v815
        %824 = vst [vmem:[%s368] sm:$0xff] %v816
        %825 = vst [vmem:[%s368 + $0x8] sm:$0xff] %v817
        %826 = vst [vmem:[%s368 + $0x10] sm:$0xff] %v818
        %827 = vst [vmem:[%s368 + $0x18] sm:$0xff] %v819
        %828 = vst [vmem:[%s368 + $0x20] sm:$0xff] %v820
        %829 = vst [vmem:[%s368 + $0x28] sm:$0xff] %v821
        %830 = vst [vmem:[%s368 + $0x30] sm:$0xff] %v822
        %831 = vst [vmem:[%s368 + $0x38] sm:$0xff] %v823
        %s832 = sand.u32 %s138, 1
        %s833 = scalar_lea.sflag [#allocation5], %s832
        %s834 = sand.u32 %s138, 1
        %s835 = smul.addr %s834, 64
        %s836 = scalar_lea.vmem [#allocation4], %s835
        // Predicated region
        $region113: #{patch_merging_forward.1} parent=103 // pred_check
          %p837 = pneg %p148
        $region114: #{patch_merging_forward.1} parent=103 // pred_check_branch
          %839 = sbr.rel (%p837) target = $region116
        $region115: #{patch_merging_forward.1} parent=103 // pred_region
          %s840 = smul.u32 8, %s23
          %s842 = ssub.s32 1024, 1024
          %843 = vsyncadd %s833, %s842
          %s844 = smul.addr %s22, 8
          %s845 = sadd.s32 %s840, %s844
          %s846 = smul.addr %s845, 128
          %s847 = scalar_lea.hbm %s4, %s846
          %s848 = sshll.u32 %s836, 4
          %s849 = int_to_ptr.vmem [resolvable:$true] %s848
          %854 = dma.vmem_to_hbm [thread:$0]  %s849, 1024, %s847, %s833, 128, 128, 8
        $region116: #{patch_merging_forward.1} parent=103 // pred_fallthru
          _
      $region104: #{patch_merging_forward.1} parent=5 // pred_fallthru
        _
      %p855 = scmp.le.s32.totalorder 2, %s13
      // Predicated region
      $region117: #{patch_merging_forward.1} parent=5 // pred_check
        %p856 = pneg %p855
      $region118: #{patch_merging_forward.1} parent=5 // pred_check_branch
        %858 = sbr.rel (%p856) target = $region120
      $region119: #{patch_merging_forward.1} parent=5 // pred_region
        %s859 = ssub.s32 %s13, 2
        // Predicated region
        $region121: #{patch_merging_forward.1} parent=119 // pred_check
          %p860 = pneg %p154
        $region122: #{patch_merging_forward.1} parent=119 // pred_check_branch
          %862 = sbr.rel (%p860) target = $region124
        $region123: #{patch_merging_forward.1} parent=119 // pred_region
          %s863 = sand.u32 %s139, 1
          %s864 = scalar_lea.sflag [#allocation5], %s863
          %s865 = sand.u32 %s139, 1
          %s866 = smul.addr %s865, 64
          %s867 = scalar_lea.vmem [#allocation4], %s866
          %868 = dma.done %s864, 1024
        $region124: #{patch_merging_forward.1} parent=119 // pred_fallthru
          _
      $region120: #{patch_merging_forward.1} parent=5 // pred_fallthru
        _
    $region6: #{patch_merging_forward.1} parent=1 // loop_footer
      %s17 = sadd.s32 1, %s13
    $region7: #{patch_merging_forward.1} parent=1 // loop_footer_branch
      %12 = sbr.rel target = $region3
    $region8: #{patch_merging_forward.1} parent=1 // loop_exit
      _
    %869 = vsyncpa [#allocation5], 1
    %s870 = scalar_lea.sflag [#allocation5], 1
    %871 = vsyncpa %s870, 1

</llo_original>
